<compile_context>
chip_gen: v7x
topology: tpu7x:2x2x1
jax: 0.10.0
libtpu: 0.0.40
codegen_flags: <defaults>
</compile_context>

<pallas_src>
import functools

import jax
import jax.numpy as jnp
from jax import lax
from jax.experimental import pallas as pl
from jax.experimental.pallas import tpu as pltpu


def _ls_ce_kernel(preds_ref, labels_ref, partial_ref, *,
                  n_valid, confidence, smooth_value, mask_rows):
    # preds_ref:   (TB, C) logits in native dtype (f32/bf16), VMEM tile
    # labels_ref:  (TB, 1) int32 labels, VMEM tile
    # partial_ref: (1, 8, 128) f32 per-tile partial-sum block (lane/sublane aligned)
    raw = preds_ref[...]                                          # native dtype tile
    x = raw.astype(jnp.float32)
    tb, c = x.shape

    # One pass over x for both max and sum; z = x - m is consumed only by exp.
    m = jnp.max(x, axis=-1, keepdims=True)                        # (TB, 1)
    sum_x = jnp.sum(x, axis=-1, keepdims=True)                    # (TB, 1)
    lse = jnp.log(jnp.sum(jnp.exp(x - m), axis=-1, keepdims=True))  # (TB, 1)

    # sum_j log_probs[j] = sum(x) - C*m - C*lse  (no pass over z needed)
    sum_logp = sum_x - c * m - c * lse                            # (TB, 1)

    # log_prob at the target class: masked select on the NATIVE-dtype tile.
    # Exact: only one element per row is nonzero, so the bf16 sum is exact.
    labels = labels_ref[...]                                      # (TB, 1) int32
    col = lax.broadcasted_iota(jnp.int32, (tb, c), 1)             # (TB, C)
    x_at_label = jnp.sum(jnp.where(col == labels, raw, 0),
                         axis=-1, keepdims=True).astype(jnp.float32)  # (TB, 1)
    logp_at_label = x_at_label - m - lse                          # (TB, 1)

    # folded smoothed cross-entropy per row
    per_row = -((confidence - smooth_value) * logp_at_label
                + smooth_value * sum_logp)                        # (TB, 1)

    if mask_rows:  # zero contributions from batch-padding rows
        i = pl.program_id(0)
        row = i * tb + lax.broadcasted_iota(jnp.int32, (tb, 1), 0)
        per_row = jnp.where(row < n_valid, per_row, 0.0)

    tile_sum = jnp.sum(per_row)
    # Full, unmasked (8,128) store; wrapper reads element [.,0,0] of each tile.
    partial_ref[...] = jnp.full(partial_ref.shape, tile_sum, dtype=jnp.float32)


def _tpu_vmem_capacity_bytes():
    """Best-effort VMEM capacity query; conservative (v7x) fallback."""
    try:
        info = pltpu.get_tpu_info()
        cap = getattr(info, "vmem_capacity_bytes", None)
        if cap:
            return int(cap)
    except Exception:
        pass
    return 64 * 1024 * 1024  # assume v7x-style per-TC VMEM if unknown


def label_smoothing_cross_entropy(preds, target, label_smoothing=0.1, block_b=None):
    """preds: (B, C) float32/bfloat16 logits, target: (B,) int labels.
    Returns scalar float32 mean label-smoothed cross-entropy."""
    B, C = preds.shape
    itemsize = jnp.dtype(preds.dtype).itemsize

    # --- generation-aware batch tile size ------------------------------------------
    vmem_cap = _tpu_vmem_capacity_bytes()
    small_vmem = vmem_cap <= 96 * 1024 * 1024          # v7x (64 MiB/TC) vs v5e/v6e (128 MiB)

    b_pad8 = ((B + 7) // 8) * 8
    if block_b is None:
        target_tile_bytes = (4 << 20) if small_vmem else (10 << 20)
        tb = target_tile_bytes // max(1, C * itemsize)
        tb = max(8, min(1024, (tb // 8) * 8))
    else:
        tb = max(8, (int(block_b) // 8) * 8)
    tb = min(tb, b_pad8)

    # Ensure >= 2 grid tiles whenever possible so v7x's 2 TensorCores both get work
    # (dimension_semantics=("parallel",) needs >=2 tiles to shard; no-op on 1-TC chips).
    if b_pad8 >= 16:
        tb = min(tb, max(8, ((b_pad8 // 2) // 8) * 8))

    num_tiles = (B + tb - 1) // tb
    Bp = num_tiles * tb

    # --- inputs: keep logits in native dtype; pad ragged batch (masked in kernel) ---
    labels2d = target.astype(jnp.int32).reshape(B, 1)
    if Bp != B:
        preds = jnp.pad(preds, ((0, Bp - B), (0, 0)))
        labels2d = jnp.pad(labels2d, ((0, Bp - B), (0, 0)))

    confidence = float(1.0 - label_smoothing)
    smooth_value = float(label_smoothing) / float(C - 1)

    kernel = functools.partial(
        _ls_ce_kernel,
        n_valid=B,
        confidence=confidence,
        smooth_value=smooth_value,
        mask_rows=(Bp != B),
    )

    # VMEM budget: double-buffered native-dtype input tile + ~3 f32-sized full-tile
    # temporaries (x, exp(x-m), iota/compare) + headroom; cap per generation.
    tile_bytes = tb * C * itemsize
    vmem_need = 2 * tile_bytes + 3 * tb * C * 4 + (1 << 20)
    vmem_ceiling = (48 << 20) if small_vmem else (96 << 20)
    vmem_limit = int(min(max(32 << 20, vmem_need), vmem_ceiling))

    cost = pl.CostEstimate(
        flops=int(7 * Bp * C),
        transcendentals=int(Bp * C + 2 * Bp),
        bytes_accessed=int(Bp * C * itemsize + Bp * 4 + num_tiles * 8 * 128 * 4),
    )

    partials = pl.pallas_call(
        kernel,
        out_shape=jax.ShapeDtypeStruct((num_tiles, 8, 128), jnp.float32),
        grid=(num_tiles,),
        in_specs=[
            pl.BlockSpec((tb, C), lambda i: (i, 0)),   # logits tile (class dim on lanes)
            pl.BlockSpec((tb, 1), lambda i: (i, 0)),   # labels tile
        ],
        out_specs=pl.BlockSpec((1, 8, 128), lambda i: (i, 0, 0)),
        compiler_params=pltpu.CompilerParams(
            dimension_semantics=("parallel",),         # independent tiles -> megacore OK
            vmem_limit_bytes=vmem_limit,
        ),
        cost_estimate=cost,
    )(preds, labels2d)

    # tiny final reduction over per-tile partial sums
    return jnp.sum(partials[:, 0, 0]) / B


if __name__ == "__main__":
    key = jax.random.PRNGKey(0)
    smoothing = 0.1

    def ref_loss(preds, target, smoothing):
        b, c = preds.shape
        log_probs = jax.nn.log_softmax(preds.astype(jnp.float32), axis=-1)
        smoothed = jnp.full((b, c), smoothing / (c - 1), dtype=jnp.float32)
        smoothed = smoothed.at[jnp.arange(b), target].set(1.0 - smoothing)
        return jnp.mean(jnp.sum(-smoothed * log_probs, axis=-1))

    k1, k2, k3, k4 = jax.random.split(key, 4)

    # Case 1: small f32 logits, single tile
    B, C = 8, 128
    preds = jax.random.normal(k1, (B, C), dtype=jnp.float32)
    target = jax.random.randint(k2, (B,), 0, C, dtype=jnp.int32)
    loss = label_smoothing_cross_entropy(preds, target, smoothing)
    jax.block_until_ready(loss)
    ref = ref_loss(preds, target, smoothing)
    assert jnp.allclose(loss, ref, rtol=1e-4, atol=1e-4), (loss, ref)

    # Case 2: bf16 logits, ragged batch, multi-tile grid (exercises padding + masking
    # and the native-dtype label gather path)
    B2, C2 = 20, 1000
    preds2 = jax.random.normal(k3, (B2, C2), dtype=jnp.float32).astype(jnp.bfloat16)
    target2 = jax.random.randint(k4, (B2,), 0, C2, dtype=jnp.int32)
    loss2 = label_smoothing_cross_entropy(preds2, target2, smoothing, block_b=8)
    jax.block_until_ready(loss2)
    ref2 = ref_loss(preds2, target2, smoothing)
    assert jnp.allclose(loss2, ref2, rtol=1e-4, atol=1e-4), (loss2, ref2)

    print("KERNEL_OK")
</pallas_src>

<mosaic_0001>
module attributes {stable_mosaic.version = 11 : i64} {
  func.func @_ls_ce_kernel(%arg0: i32, %arg1: memref<8x128xf32, #tpu.memory_space<vmem>>, %arg2: memref<8x1xi32, #tpu.memory_space<vmem>>, %arg3: memref<1x8x128xf32, #tpu.memory_space<vmem>>) attributes {dimension_semantics = [#tpu.dimension_semantics<parallel>], iteration_bounds = array<i64: 1>, scalar_prefetch = 0 : i64, scratch_operands = 0 : i64, tpu.core_type = #tpu.core_type<tc>, window_params = [{transform_indices = @transform_0, window_bounds = array<i64: 8, 128>}, {transform_indices = @transform_1, window_bounds = array<i64: 8, 1>}, {transform_indices = @transform_2, window_bounds = array<i64: 1, 8, 128>}]} {
    %c0 = arith.constant 0 : index
    %c0_0 = arith.constant 0 : index
    %0 = vector.load %arg1[%c0, %c0_0] : memref<8x128xf32, #tpu.memory_space<vmem>>, vector<8x128xf32>
    %cst = arith.constant dense<0xFF800000> : vector<8xf32>
    %1 = vector.multi_reduction <maximumf>, %0, %cst [1] : vector<8x128xf32> to vector<8xf32>
    %2 = vector.shape_cast %1 : vector<8xf32> to vector<8x1xf32>
    %cst_1 = arith.constant dense<0.000000e+00> : vector<8xf32>
    %3 = vector.multi_reduction <add>, %0, %cst_1 [1] : vector<8x128xf32> to vector<8xf32>
    %4 = vector.shape_cast %3 : vector<8xf32> to vector<8x1xf32>
    %5 = vector.broadcast %2 : vector<8x1xf32> to vector<8x128xf32>
    %6 = arith.subf %0, %5 : vector<8x128xf32>
    %7 = math.exp %6 : vector<8x128xf32>
    %cst_2 = arith.constant dense<0.000000e+00> : vector<8xf32>
    %8 = vector.multi_reduction <add>, %7, %cst_2 [1] : vector<8x128xf32> to vector<8xf32>
    %9 = vector.shape_cast %8 : vector<8xf32> to vector<8x1xf32>
    %10 = math.log %9 : vector<8x1xf32>
    %cst_3 = arith.constant 1.280000e+02 : f32
    %11 = vector.broadcast %cst_3 : f32 to vector<8x1xf32>
    %12 = arith.mulf %11, %2 : vector<8x1xf32>
    %13 = arith.subf %4, %12 : vector<8x1xf32>
    %cst_4 = arith.constant 1.280000e+02 : f32
    %14 = vector.broadcast %cst_4 : f32 to vector<8x1xf32>
    %15 = arith.mulf %14, %10 : vector<8x1xf32>
    %16 = arith.subf %13, %15 : vector<8x1xf32>
    %c0_5 = arith.constant 0 : index
    %c0_6 = arith.constant 0 : index
    %17 = vector.load %arg2[%c0_5, %c0_6] : memref<8x1xi32, #tpu.memory_space<vmem>>, vector<8x1xi32>
    %18 = tpu.iota {dimensions = array<i32: 1>} : vector<8x128xi32>
    %19 = vector.broadcast %17 : vector<8x1xi32> to vector<8x128xi32>
    %20 = arith.cmpi eq, %18, %19 : vector<8x128xi32>
    %c0_i32 = arith.constant 0 : i32
    %21 = arith.sitofp %c0_i32 : i32 to f32
    %22 = vector.broadcast %21 : f32 to vector<8x128xf32>
    %23 = arith.select %20, %0, %22 : vector<8x128xi1>, vector<8x128xf32>
    %cst_7 = arith.constant dense<0.000000e+00> : vector<8xf32>
    %24 = vector.multi_reduction <add>, %23, %cst_7 [1] : vector<8x128xf32> to vector<8xf32>
    %25 = vector.shape_cast %24 : vector<8xf32> to vector<8x1xf32>
    %26 = arith.subf %25, %2 : vector<8x1xf32>
    %27 = arith.subf %26, %10 : vector<8x1xf32>
    %cst_8 = arith.constant 0.899212599 : f32
    %28 = vector.broadcast %cst_8 : f32 to vector<8x1xf32>
    %29 = arith.mulf %28, %27 : vector<8x1xf32>
    %cst_9 = arith.constant 7.87401571E-4 : f32
    %30 = vector.broadcast %cst_9 : f32 to vector<8x1xf32>
    %31 = arith.mulf %30, %16 : vector<8x1xf32>
    %32 = arith.addf %29, %31 : vector<8x1xf32>
    %cst_10 = arith.constant 0.000000e+00 : f32
    %33 = vector.broadcast %cst_10 : f32 to vector<8x1xf32>
    %34 = arith.subf %33, %32 : vector<8x1xf32>
    %35 = vector.shape_cast %34 : vector<8x1xf32> to vector<1x8x1xf32>
    %cst_11 = arith.constant dense<0.000000e+00> : vector<1xf32>
    %36 = vector.multi_reduction <add>, %35, %cst_11 [1, 2] : vector<1x8x1xf32> to vector<1xf32>
    %37 = vector.shape_cast %36 : vector<1xf32> to vector<1x1x1xf32>
    %38 = vector.extract %37[0, 0, 0] : f32 from vector<1x1x1xf32>
    %39 = vector.broadcast %38 : f32 to vector<1x8x128xf32>
    %c0_12 = arith.constant 0 : index
    %c0_13 = arith.constant 0 : index
    %c0_14 = arith.constant 0 : index
    %40 = vector.load %arg3[%c0_12, %c0_13, %c0_14] : memref<1x8x128xf32, #tpu.memory_space<vmem>>, vector<1x8x128xf32>
    tpu.vector_store %arg3[%c0_12, %c0_13, %c0_14], %39 {strides = array<i32>} : memref<1x8x128xf32, #tpu.memory_space<vmem>>, vector<1x8x128xf32>,
    return
  }
  func.func @transform_0(%arg0: i32) -> (i32, i32) {
    %c0_i32 = arith.constant 0 : i32
    %c0_i32_0 = arith.constant 0 : i32
    return %arg0, %c0_i32 : i32, i32
  }
  func.func @transform_1(%arg0: i32) -> (i32, i32) {
    %c0_i32 = arith.constant 0 : i32
    %c0_i32_0 = arith.constant 0 : i32
    return %arg0, %c0_i32 : i32, i32
  }
  func.func @transform_2(%arg0: i32) -> (i32, i32, i32) {
    %c0_i32 = arith.constant 0 : i32
    %c0_i32_0 = arith.constant 0 : i32
    %c0_i32_1 = arith.constant 0 : i32
    return %arg0, %c0_i32, %c0_i32_0 : i32, i32, i32
  }
}

</mosaic_0001>

<llo_original>
// kernel: tpu_custom_call.1
$region0: #{tpu_custom_call.1}
  #allocation0 [shape = 'u32[]', space=smem, size = 0x4, offset = 0x4, fixed_abs, tag = 'smem constant byte address 0x4 - core index']
  #allocation1 [shape = 'u32[144,128]{1,0:T(1,128)}', space=vmem, size = 0x12000, scoped, tag = 'internal scratch']
  %s0 = inlined_call_operand.vmem [shape: f32[8,128], index: 0, kind: input, shape index: {}]
  %s1 = inlined_call_operand.vmem [shape: s32[8,1], index: 1, kind: input, shape index: {}]
  %s2 = inlined_call_operand.hbm [shape: f32[1,8,128], index: 2, kind: output, shape index: {}]
  %s3 = sld [smem:[#allocation0]]
  $region18: #{tpu_custom_call.1} parent=0
    _
  %s5 = ssub.s32 1, %s3
  %s6 = scalar_select 0, %s5, %s3
  $region1: #{tpu_custom_call.1} parent=0
    #allocation2 [shape = 'u8[4096]{0}', space=vmem, size = 0x1000, scoped, tag = 'output window, operand 0, single buffered']
    #allocation3 [shape = 's32[1]{0}', space=sflag, size = 0x4, scoped, tag = 'scoped memory for tpu_custom_call.1']
    %7 = vsyncpa [#allocation3], 0
    // Predicated region
    $region2: #{tpu_custom_call.1} parent=1 // pred_check
      _
    $region3: #{tpu_custom_call.1} parent=1 // pred_check_branch
      %9 = sbr.rel (0) target = $region5
    $region4: #{tpu_custom_call.1} parent=1 // pred_region
      _
    $region5: #{tpu_custom_call.1} parent=1 // pred_fallthru
      _
    // Predicated region
    $region6: #{tpu_custom_call.1} parent=1 // pred_check
      _
    $region7: #{tpu_custom_call.1} parent=1 // pred_check_branch
      %11 = sbr.rel (0) target = $region9
    $region8: #{tpu_custom_call.1} parent=1 // pred_region
      _
    $region9: #{tpu_custom_call.1} parent=1 // pred_fallthru
      _
    %v12 = vld [vmem:[%s0] sm:$0xff]
    %13 = vmax.xlane.f32.xlu0 %v12
    %v14 = vpop.xlane.xlu0 %13
    %15 = vadd.xlane.f32.xlu0 %v12
    %v16 = vpop.xlane.xlu0 %15
    %v17 = vsub.f32 %v12, %v14
    %v18 = vmul.f32 %v17, 1.442695
    %v19 = vpow.pop %v18
    %20 = vadd.xlane.f32.xlu0 %v19
    %v21 = vpop.xlane.xlu0 %20
    %v22 = vlog2.pop %v21
    %v23 = vmul.f32 %v22, 0.6931472
    %v24 = vmul.f32 %v14, 128.0
    %v25 = vsub.f32 %v16, %v24
    %v26 = vmul.f32 %v23, 128.0
    %v27 = vsub.f32 %v25, %v26
    %v28 = vld [vmem:[%s1] sm:$0xff]
    %v29 = vlaneseq
    %v30 = vand.u32 %v29, 127
    %31 = vset.pattern.permute.xlu0 0
    %32 = vperm.xlu0 %31, %v28
    %v33 = vpop.permute.xlu0 %32
    %vm34 = vcmp.eq.s32.totalorder %v30, %v33
    %v35 = vsel %vm34, %v12, 0.0
    %36 = vadd.xlane.f32.xlu0 %v35
    %v37 = vpop.xlane.xlu0 %36
    %v38 = vsub.f32 %v37, %v14
    %v39 = vsub.f32 %v38, %v23
    %v40 = vmul.f32 %v39, 0.8992126
    %v41 = vmul.f32 %v27, 0.0007874016
    %v42 = vadd.f32 %v40, %v41
    %v43 = vsub.f32 0.0, %v42
    %vm44 = vcmask 7168
    %v45 = vsel %vm44, %v43, 0.0
    %46 = vadd.xlane.f32.xlu0 %v45
    %v47 = vpop.xlane.xlu0 %46
    %v48 = vrot.slane %v47, 4
    %v49 = vadd.f32 %v47, %v48
    %v50 = vrot.slane %v49, 2
    %v51 = vadd.f32 %v49, %v50
    %v52 = vrot.slane %v51, 1
    %v53 = vadd.f32 %v51, %v52
    %s54 = vtos %v53
    %v55 = vstv %s54
    %56 = vst [vmem:[#allocation2] sm:$0xff] %v55
    // Predicated region
    $region10: #{tpu_custom_call.1} parent=1 // pred_check
      _
    $region11: #{tpu_custom_call.1} parent=1 // pred_check_branch
      %58 = sbr.rel (0) target = $region13
    $region12: #{tpu_custom_call.1} parent=1 // pred_region
      %s60 = ssub.s32 128, 128
      %61 = vsyncadd [#allocation3], %s60
      %s63 = sshll.u32 [#allocation2], 4
      %s64 = int_to_ptr.vmem [resolvable:$true] %s63
      %66 = dma.vmem_to_hbm [thread:$0]  %s64, 128, %s2, [#allocation3]
    $region13: #{tpu_custom_call.1} parent=1 // pred_fallthru
      _
    // Predicated region
    $region14: #{tpu_custom_call.1} parent=1 // pred_check
      _
    $region15: #{tpu_custom_call.1} parent=1 // pred_check_branch
      %68 = sbr.rel (0) target = $region17
    $region16: #{tpu_custom_call.1} parent=1 // pred_region
      %69 = dma.done [#allocation3], 128
    $region17: #{tpu_custom_call.1} parent=1 // pred_fallthru
      _
    %70 = vsyncpa [#allocation3], 1

</llo_original>
